<compile_context>
chip_gen: v5e
topology: v5e:2x2
jax: 0.10.0
libtpu: 0.0.40
codegen_flags: <defaults>
</compile_context>

<pallas_src>
import functools

import jax
import jax.numpy as jnp
from jax.experimental import pallas as pl
from jax.experimental.pallas import tpu as pltpu

LANE = 128


def _round_up(x, m):
    return (x + m - 1) // m * m


def mdn_kernel(x_ref, wh_ref, bh_ref, wo_ref, bo_ref, out_ref, *, n_gaussians):
    # Hidden layer: Linear + tanh (bf16 MXU inputs, f32 accumulation/elementwise).
    z_h = jnp.tanh(
        jnp.dot(x_ref[...], wh_ref[...], preferred_element_type=jnp.float32)
        + bh_ref[...])

    # One fused head matmul over the lane-padded slab.
    # Columns: [0:G) pi logits, [G:2G) sigma logits, [2G:3G) mu logits, rest pad.
    logits = (jnp.dot(z_h.astype(wo_ref.dtype), wo_ref[...],
                      preferred_element_type=jnp.float32)
              + bo_ref[...])

    G = n_gaussians
    out_pad = logits.shape[-1]
    out_dim = out_ref.shape[-1]

    # (1, out_pad) masks; broadcasting happens inside the selects so we never
    # materialize (tb, 128) iota / bool temporaries.
    col = jax.lax.broadcasted_iota(jnp.int32, (1, out_pad), 1)
    is_pi = col < G
    is_sigma = (col >= G) & (col < 2 * G)
    is_mu = (col >= 2 * G) & (col < 3 * G)

    neg_inf = jnp.float32(-jnp.inf)

    # Numerically-stable softmax max over the pi columns only.
    m = jnp.max(jnp.where(is_pi, logits, neg_inf), axis=-1, keepdims=True)

    # Single fused exp pass over the whole slab (one EUP sweep):
    #   pi cols    -> exp(logit - m)   (softmax numerator)
    #   sigma cols -> exp(logit)       (sigma itself)
    #   mu / pad   -> exp(-inf) = 0    (keeps them out of the pi denominator)
    e_all = jnp.exp(jnp.where(is_pi, logits - m,
                              jnp.where(is_sigma, logits, neg_inf)))

    denom = jnp.sum(jnp.where(is_pi, e_all, 0.0), axis=-1, keepdims=True)
    inv_denom = 1.0 / denom  # exact; (tb, 1)-wide so cost is negligible

    mu_vals = jnp.maximum(logits, 0.0)
    result = jnp.where(is_mu, mu_vals,
                       jnp.where(is_pi, e_all * inv_denom, e_all))

    # Store only the 3G useful columns back to HBM (drop the lane padding).
    out_ref[...] = result[:, :out_dim]


def mdn_forward(x, params, *, tile_b=1024, matmul_dtype=jnp.bfloat16):
    """x: (B, input_dim) f32. params: dict of weights/biases. Returns (pi, sigma, mu)."""
    B, d_in = x.shape
    H = params["w_h"].shape[1]
    G = params["w_pi"].shape[1]

    H_pad = _round_up(H, LANE)
    out_dim = 3 * G
    out_pad = _round_up(out_dim, LANE)

    # Hidden-layer weights, lane-padded hidden dim (tanh(0) = 0 so pad is inert,
    # and the padded rows of the fused head weights are zero below).
    w_h = params["w_h"]
    b_h = params["b_h"]
    if H_pad != H:
        w_h = jnp.pad(w_h, ((0, 0), (0, H_pad - H)))
        b_h = jnp.pad(b_h, ((0, 0), (0, H_pad - H)))

    # Fuse the three heads into one (H_pad, out_pad) projection.
    w_heads = jnp.concatenate(
        [params["w_pi"], params["w_sigma"], params["w_mu"]], axis=1)
    b_heads = jnp.concatenate(
        [params["b_pi"], params["b_sigma"], params["b_mu"]], axis=1)
    w_heads = jnp.pad(w_heads, ((0, H_pad - H), (0, out_pad - out_dim)))
    b_heads = jnp.pad(b_heads, ((0, 0), (0, out_pad - out_dim)))

    # Narrow only the MXU inputs (halves x/weight DMA and weight residency);
    # biases, accumulation, elementwise math and the output all stay f32.
    x_mm = x.astype(matmul_dtype)
    w_h = w_h.astype(matmul_dtype)
    w_heads = w_heads.astype(matmul_dtype)

    # Batch tile: multiple of 8 sublanes; big tiles amortize the ~0.35us/step
    # overhead. On v7x the "parallel" axis is sharded across 2 TensorCores, so
    # for large batches cap the tile to keep >= ~3 steps per core (but never
    # drop below 256 rows, where mem-bound efficiency starts to fall off).
    b8 = _round_up(B, 8)
    tb = _round_up(min(tile_b, b8), 8)
    min_steps = 6
    if b8 >= min_steps * 256:
        tb = min(tb, max(256, (b8 // min_steps) // 8 * 8))
    b_pad = _round_up(B, tb)
    if b_pad != B:
        x_mm = jnp.pad(x_mm, ((0, b_pad - B), (0, 0)))

    grid = (pl.cdiv(b_pad, tb),)
    kernel = functools.partial(mdn_kernel, n_gaussians=G)

    itemsize = jnp.dtype(matmul_dtype).itemsize
    cost = pl.CostEstimate(
        flops=2 * b_pad * (d_in * H_pad + H_pad * out_pad),
        transcendentals=b_pad * (H_pad + out_pad),  # tanh + one fused exp
        bytes_accessed=(b_pad * d_in * itemsize                      # x
                        + d_in * H_pad * itemsize + 4 * H_pad        # w_h, b_h
                        + H_pad * out_pad * itemsize + 4 * out_pad   # fused heads
                        + b_pad * out_dim * 4))                      # output

    out = pl.pallas_call(
        kernel,
        out_shape=jax.ShapeDtypeStruct((b_pad, out_dim), jnp.float32),
        grid_spec=pltpu.PrefetchScalarGridSpec(
            num_scalar_prefetch=0,
            grid=grid,
            in_specs=[
                pl.BlockSpec((tb, d_in), lambda i: (i, 0)),        # x: batch-tiled
                pl.BlockSpec((d_in, H_pad), lambda i: (0, 0)),     # w_h: VMEM-resident
                pl.BlockSpec((1, H_pad), lambda i: (0, 0)),        # b_h
                pl.BlockSpec((H_pad, out_pad), lambda i: (0, 0)),  # fused head weights
                pl.BlockSpec((1, out_pad), lambda i: (0, 0)),      # fused head bias
            ],
            out_specs=pl.BlockSpec((tb, out_dim), lambda i: (i, 0)),
        ),
        compiler_params=pltpu.CompilerParams(
            dimension_semantics=("parallel",),
            vmem_limit_bytes=32 * 1024 * 1024,
        ),
        cost_estimate=cost,
    )(x_mm, w_h, b_h, w_heads, b_heads)

    pi = out[:B, 0:G]
    sigma = out[:B, G:2 * G]
    mu = out[:B, 2 * G:3 * G]
    return pi, sigma, mu


def init_params(key, input_dim, n_hidden, n_gaussians):
    """Deterministic synthetic init (uniform, roughly like torch Linear default)."""
    keys = jax.random.split(key, 8)

    def lin(kw, kb, fan_in, fan_out):
        bound = 1.0 / jnp.sqrt(fan_in)
        w = jax.random.uniform(kw, (fan_in, fan_out), jnp.float32, -bound, bound)
        b = jax.random.uniform(kb, (1, fan_out), jnp.float32, -bound, bound)
        return w, b

    w_h, b_h = lin(keys[0], keys[1], input_dim, n_hidden)
    w_pi, b_pi = lin(keys[2], keys[3], n_hidden, n_gaussians)
    w_sigma, b_sigma = lin(keys[4], keys[5], n_hidden, n_gaussians)
    w_mu, b_mu = lin(keys[6], keys[7], n_hidden, n_gaussians)

    return dict(w_h=w_h, b_h=b_h,
                w_pi=w_pi, b_pi=b_pi,
                w_sigma=w_sigma, b_sigma=b_sigma,
                w_mu=w_mu, b_mu=b_mu)


def mdn_reference(x, p):
    """Pure-JAX f32 reference mirroring the PyTorch forward."""
    z_h = jnp.tanh(x @ p["w_h"] + p["b_h"])
    pi = jax.nn.softmax(z_h @ p["w_pi"] + p["b_pi"], axis=-1)
    sigma = jnp.exp(z_h @ p["w_sigma"] + p["b_sigma"])
    mu = jax.nn.relu(z_h @ p["w_mu"] + p["b_mu"])
    return pi, sigma, mu


if __name__ == "__main__":
    key = jax.random.PRNGKey(0)
    k_x, k_p = jax.random.split(key)

    batch, input_dim, n_hidden, n_gaussians = 8, 16, 32, 8

    x = jax.random.normal(k_x, (batch, input_dim), jnp.float32)
    params = init_params(k_p, input_dim, n_hidden, n_gaussians)

    pi, sigma, mu = mdn_forward(x, params)
    jax.block_until_ready((pi, sigma, mu))

    # Sanity-check against the pure-JAX f32 reference. MXU inputs are bf16 in
    # the kernel, so tolerances are set for bf16 matmul rounding.
    pi_r, sigma_r, mu_r = mdn_reference(x, params)
    assert pi.shape == (batch, n_gaussians)
    assert sigma.shape == (batch, n_gaussians)
    assert mu.shape == (batch, n_gaussians)
    assert jnp.allclose(pi, pi_r, atol=3e-2, rtol=3e-2)
    assert jnp.allclose(sigma, sigma_r, atol=3e-2, rtol=3e-2)
    assert jnp.allclose(mu, mu_r, atol=3e-2, rtol=3e-2)
    # Exact reciprocal in the kernel -> rows of pi sum to 1 to f32 precision.
    assert jnp.allclose(jnp.sum(pi, axis=-1), 1.0, atol=1e-3)

    print("KERNEL_OK")
</pallas_src>

<mosaic_0001>
module attributes {stable_mosaic.version = 11 : i64} {
  func.func @mdn_kernel(%arg0: i32, %arg1: memref<8x16xbf16, #tpu.memory_space<vmem>>, %arg2: memref<16x128xbf16, #tpu.memory_space<vmem>>, %arg3: memref<1x128xf32, #tpu.memory_space<vmem>>, %arg4: memref<128x128xbf16, #tpu.memory_space<vmem>>, %arg5: memref<1x128xf32, #tpu.memory_space<vmem>>, %arg6: memref<8x24xf32, #tpu.memory_space<vmem>>) attributes {dimension_semantics = [#tpu.dimension_semantics<parallel>], iteration_bounds = array<i64: 1>, scalar_prefetch = 0 : i64, scratch_operands = 0 : i64, tpu.core_type = #tpu.core_type<tc>, window_params = [{transform_indices = @transform_0, window_bounds = array<i64: 8, 16>}, {pipeline_mode = #tpu.pipeline_mode<synchronous>, transform_indices = @transform_1, window_bounds = array<i64: 16, 128>}, {pipeline_mode = #tpu.pipeline_mode<synchronous>, transform_indices = @transform_2, window_bounds = array<i64: 1, 128>}, {pipeline_mode = #tpu.pipeline_mode<synchronous>, transform_indices = @transform_3, window_bounds = array<i64: 128, 128>}, {pipeline_mode = #tpu.pipeline_mode<synchronous>, transform_indices = @transform_4, window_bounds = array<i64: 1, 128>}, {transform_indices = @transform_5, window_bounds = array<i64: 8, 24>}]} {
    %c0 = arith.constant 0 : index
    %c0_0 = arith.constant 0 : index
    %0 = vector.load %arg1[%c0, %c0_0] : memref<8x16xbf16, #tpu.memory_space<vmem>>, vector<8x16xbf16>
    %c0_1 = arith.constant 0 : index
    %c0_2 = arith.constant 0 : index
    %1 = vector.load %arg2[%c0_1, %c0_2] : memref<16x128xbf16, #tpu.memory_space<vmem>>, vector<16x128xbf16>
    %cst = arith.constant dense<0.000000e+00> : vector<8x128xf32>
    %2 = tpu.matmul %0, %1, %cst {dimension_numbers = #tpu.dot_dimension_numbers<[1], [0], [0], [1], [0, 0, 1, 1], [], []>} : vector<8x16xbf16>, vector<16x128xbf16>, vector<8x128xf32> -> vector<8x128xf32>
    %c0_3 = arith.constant 0 : index
    %c0_4 = arith.constant 0 : index
    %3 = vector.load %arg3[%c0_3, %c0_4] : memref<1x128xf32, #tpu.memory_space<vmem>>, vector<1x128xf32>
    %4 = vector.broadcast %3 : vector<1x128xf32> to vector<8x128xf32>
    %5 = arith.addf %2, %4 : vector<8x128xf32>
    %6 = math.tanh %5 : vector<8x128xf32>
    %7 = arith.truncf %6 : vector<8x128xf32> to vector<8x128xbf16>
    %c0_5 = arith.constant 0 : index
    %c0_6 = arith.constant 0 : index
    %8 = vector.load %arg4[%c0_5, %c0_6] : memref<128x128xbf16, #tpu.memory_space<vmem>>, vector<128x128xbf16>
    %cst_7 = arith.constant dense<0.000000e+00> : vector<8x128xf32>
    %9 = tpu.matmul %7, %8, %cst_7 {dimension_numbers = #tpu.dot_dimension_numbers<[1], [0], [0], [1], [0, 0, 1, 1], [], []>} : vector<8x128xbf16>, vector<128x128xbf16>, vector<8x128xf32> -> vector<8x128xf32>
    %c0_8 = arith.constant 0 : index
    %c0_9 = arith.constant 0 : index
    %10 = vector.load %arg5[%c0_8, %c0_9] : memref<1x128xf32, #tpu.memory_space<vmem>>, vector<1x128xf32>
    %11 = vector.broadcast %10 : vector<1x128xf32> to vector<8x128xf32>
    %12 = arith.addf %9, %11 : vector<8x128xf32>
    %13 = tpu.iota {dimensions = array<i32: 1>} : vector<1x128xi32>
    %c8_i32 = arith.constant 8 : i32
    %14 = vector.broadcast %c8_i32 : i32 to vector<1x128xi32>
    %15 = arith.cmpi slt, %13, %14 : vector<1x128xi32>
    %c8_i32_10 = arith.constant 8 : i32
    %16 = vector.broadcast %c8_i32_10 : i32 to vector<1x128xi32>
    %17 = arith.cmpi sge, %13, %16 : vector<1x128xi32>
    %c16_i32 = arith.constant 16 : i32
    %18 = vector.broadcast %c16_i32 : i32 to vector<1x128xi32>
    %19 = arith.cmpi slt, %13, %18 : vector<1x128xi32>
    %20 = arith.andi %17, %19 : vector<1x128xi1>
    %c16_i32_11 = arith.constant 16 : i32
    %21 = vector.broadcast %c16_i32_11 : i32 to vector<1x128xi32>
    %22 = arith.cmpi sge, %13, %21 : vector<1x128xi32>
    %c24_i32 = arith.constant 24 : i32
    %23 = vector.broadcast %c24_i32 : i32 to vector<1x128xi32>
    %24 = arith.cmpi slt, %13, %23 : vector<1x128xi32>
    %25 = arith.andi %22, %24 : vector<1x128xi1>
    %cst_12 = arith.constant 0xFF800000 : f32
    %26 = vector.shape_cast %15 : vector<1x128xi1> to vector<1x128xi1>
    %27 = vector.broadcast %26 : vector<1x128xi1> to vector<8x128xi1>
    %28 = vector.broadcast %cst_12 : f32 to vector<8x128xf32>
    %29 = arith.select %27, %12, %28 : vector<8x128xi1>, vector<8x128xf32>
    %cst_13 = arith.constant dense<0xFF800000> : vector<8xf32>
    %30 = vector.multi_reduction <maximumf>, %29, %cst_13 [1] : vector<8x128xf32> to vector<8xf32>
    %31 = vector.shape_cast %30 : vector<8xf32> to vector<8x1xf32>
    %32 = vector.broadcast %31 : vector<8x1xf32> to vector<8x128xf32>
    %33 = arith.subf %12, %32 : vector<8x128xf32>
    %cst_14 = arith.constant 0xFF800000 : f32
    %34 = vector.shape_cast %20 : vector<1x128xi1> to vector<1x128xi1>
    %35 = vector.broadcast %34 : vector<1x128xi1> to vector<8x128xi1>
    %36 = vector.broadcast %cst_14 : f32 to vector<8x128xf32>
    %37 = arith.select %35, %12, %36 : vector<8x128xi1>, vector<8x128xf32>
    %38 = vector.shape_cast %15 : vector<1x128xi1> to vector<1x128xi1>
    %39 = vector.broadcast %38 : vector<1x128xi1> to vector<8x128xi1>
    %40 = arith.select %39, %33, %37 : vector<8x128xi1>, vector<8x128xf32>
    %41 = math.exp %40 : vector<8x128xf32>
    %cst_15 = arith.constant 0.000000e+00 : f32
    %42 = vector.shape_cast %15 : vector<1x128xi1> to vector<1x128xi1>
    %43 = vector.broadcast %42 : vector<1x128xi1> to vector<8x128xi1>
    %44 = vector.broadcast %cst_15 : f32 to vector<8x128xf32>
    %45 = arith.select %43, %41, %44 : vector<8x128xi1>, vector<8x128xf32>
    %cst_16 = arith.constant dense<0.000000e+00> : vector<8xf32>
    %46 = vector.multi_reduction <add>, %45, %cst_16 [1] : vector<8x128xf32> to vector<8xf32>
    %47 = vector.shape_cast %46 : vector<8xf32> to vector<8x1xf32>
    %cst_17 = arith.constant 1.000000e+00 : f32
    %48 = vector.broadcast %cst_17 : f32 to vector<8x1xf32>
    %49 = arith.divf %48, %47 : vector<8x1xf32>
    %cst_18 = arith.constant 0.000000e+00 : f32
    %50 = vector.broadcast %cst_18 : f32 to vector<8x128xf32>
    %51 = arith.maximumf %12, %50 : vector<8x128xf32>
    %52 = vector.broadcast %49 : vector<8x1xf32> to vector<8x128xf32>
    %53 = arith.mulf %41, %52 : vector<8x128xf32>
    %54 = vector.shape_cast %15 : vector<1x128xi1> to vector<1x128xi1>
    %55 = vector.broadcast %54 : vector<1x128xi1> to vector<8x128xi1>
    %56 = arith.select %55, %53, %41 : vector<8x128xi1>, vector<8x128xf32>
    %57 = vector.shape_cast %25 : vector<1x128xi1> to vector<1x128xi1>
    %58 = vector.broadcast %57 : vector<1x128xi1> to vector<8x128xi1>
    %59 = arith.select %58, %51, %56 : vector<8x128xi1>, vector<8x128xf32>
    %60 = vector.extract_strided_slice %59 {offsets = [0, 0], sizes = [8, 24], strides = [1, 1]} : vector<8x128xf32> to vector<8x24xf32>
    %c0_19 = arith.constant 0 : index
    %c0_20 = arith.constant 0 : index
    %61 = vector.load %arg6[%c0_19, %c0_20] : memref<8x24xf32, #tpu.memory_space<vmem>>, vector<8x24xf32>
    tpu.vector_store %arg6[%c0_19, %c0_20], %60 {strides = array<i32>} : memref<8x24xf32, #tpu.memory_space<vmem>>, vector<8x24xf32>,
    return
  }
  func.func @transform_0(%arg0: i32) -> (i32, i32) {
    %c0_i32 = arith.constant 0 : i32
    %c0_i32_0 = arith.constant 0 : i32
    return %arg0, %c0_i32 : i32, i32
  }
  func.func @transform_1(%arg0: i32) -> (i32, i32) {
    %c0_i32 = arith.constant 0 : i32
    %c0_i32_0 = arith.constant 0 : i32
    %c0_i32_1 = arith.constant 0 : i32
    return %c0_i32, %c0_i32_0 : i32, i32
  }
  func.func @transform_2(%arg0: i32) -> (i32, i32) {
    %c0_i32 = arith.constant 0 : i32
    %c0_i32_0 = arith.constant 0 : i32
    %c0_i32_1 = arith.constant 0 : i32
    return %c0_i32, %c0_i32_0 : i32, i32
  }
  func.func @transform_3(%arg0: i32) -> (i32, i32) {
    %c0_i32 = arith.constant 0 : i32
    %c0_i32_0 = arith.constant 0 : i32
    %c0_i32_1 = arith.constant 0 : i32
    return %c0_i32, %c0_i32_0 : i32, i32
  }
  func.func @transform_4(%arg0: i32) -> (i32, i32) {
    %c0_i32 = arith.constant 0 : i32
    %c0_i32_0 = arith.constant 0 : i32
    %c0_i32_1 = arith.constant 0 : i32
    return %c0_i32, %c0_i32_0 : i32, i32
  }
  func.func @transform_5(%arg0: i32) -> (i32, i32) {
    %c0_i32 = arith.constant 0 : i32
    %c0_i32_0 = arith.constant 0 : i32
    return %arg0, %c0_i32 : i32, i32
  }
}

</mosaic_0001>

<llo_original>
// kernel: tpu_custom_call.1
$region0: #{tpu_custom_call.1}
  #allocation0 [shape = 'u32[]', space=smem, size = 0x4, offset = 0x4, fixed_abs, tag = 'smem constant byte address 0x4 - core index']
  #allocation1 [shape = 'u32[72,128]{1,0:T(1,128)}', space=vmem, size = 0x9000, scoped, tag = 'internal scratch']
  %s0 = inlined_call_operand.hbm [shape: bf16[8,16], index: 0, kind: input, shape index: {}]
  %s1 = inlined_call_operand.hbm [shape: bf16[16,128], index: 1, kind: input, shape index: {}]
  %s2 = inlined_call_operand.vmem [shape: f32[1,128], index: 2, kind: input, shape index: {}]
  %s3 = inlined_call_operand.hbm [shape: bf16[128,128], index: 3, kind: input, shape index: {}]
  %s4 = inlined_call_operand.vmem [shape: f32[1,128], index: 4, kind: input, shape index: {}]
  %s5 = inlined_call_operand.hbm [shape: f32[8,24], index: 5, kind: output, shape index: {}]
  %s6 = sld [smem:[#allocation0]]
  $region42: #{tpu_custom_call.1} parent=0
    _
  %s8 = ssub.s32 1, %s6
  %s9 = scalar_select 0, %s8, %s6
  $region1: #{tpu_custom_call.1} parent=0
    #allocation2 [shape = 'u8[2048]{0}', space=vmem, size = 0x800, scoped, tag = 'input window, operand 0, single buffered']
    #allocation3 [shape = 's32[1]{0}', space=sflag, size = 0x4, scoped, tag = 'scoped memory for tpu_custom_call.1']
    #allocation4 [shape = 's32[1]{0}', space=sflag, size = 0x4, scoped, tag = 'scoped memory for tpu_custom_call.1']
    #allocation5 [shape = 'u8[4096]{0}', space=vmem, size = 0x1000, scoped, tag = 'input window, operand 1, single buffered']
    #allocation6 [shape = 's32[1]{0}', space=sflag, size = 0x4, scoped, tag = 'scoped memory for tpu_custom_call.1']
    #allocation7 [shape = 'u8[32768]{0}', space=vmem, size = 0x8000, scoped, tag = 'input window, operand 3, single buffered']
    #allocation8 [shape = 'u8[4096]{0}', space=vmem, size = 0x1000, scoped, tag = 'output window, operand 0, single buffered']
    %10 = vsyncpa [#allocation3], 0
    %11 = vsyncpa [#allocation6], 0
    %12 = vsyncpa [#allocation4], 0
    // Predicated region
    $region2: #{tpu_custom_call.1} parent=1 // pred_check
      _
    $region3: #{tpu_custom_call.1} parent=1 // pred_check_branch
      %14 = sbr.rel (0) target = $region5
    $region4: #{tpu_custom_call.1} parent=1 // pred_region
      %16 = vsyncadd [#allocation3], 0
      %s18 = sshll.u32 %s0, 4
      %s19 = int_to_ptr.hbm [resolvable:$true] %s18
      %s20 = sshll.u32 [#allocation2], 4
      %s21 = int_to_ptr.vmem [resolvable:$true] %s20
      %23 = dma.hbm_to_vmem [thread:$0]  %s19, 64, %s21, [#allocation3]
    $region5: #{tpu_custom_call.1} parent=1 // pred_fallthru
      _
    // Predicated region
    $region6: #{tpu_custom_call.1} parent=1 // pred_check
      _
    $region7: #{tpu_custom_call.1} parent=1 // pred_check_branch
      %25 = sbr.rel (0) target = $region9
    $region8: #{tpu_custom_call.1} parent=1 // pred_region
      %27 = vsyncadd [#allocation6], 0
      %s28 = sshll.u32 %s1, 4
      %s29 = int_to_ptr.hbm [resolvable:$true] %s28
      %s30 = sshll.u32 [#allocation5], 4
      %s31 = int_to_ptr.vmem [resolvable:$true] %s30
      %36 = dma.hbm_to_vmem [thread:$0]  %s29, 128, %s31, [#allocation6], 64, 64, 4
    $region9: #{tpu_custom_call.1} parent=1 // pred_fallthru
      _
    // Predicated region
    $region10: #{tpu_custom_call.1} parent=1 // pred_check
      _
    $region11: #{tpu_custom_call.1} parent=1 // pred_check_branch
      %38 = sbr.rel (0) target = $region13
    $region12: #{tpu_custom_call.1} parent=1 // pred_region
      _
    $region13: #{tpu_custom_call.1} parent=1 // pred_fallthru
      _
    // Predicated region
    $region14: #{tpu_custom_call.1} parent=1 // pred_check
      _
    $region15: #{tpu_custom_call.1} parent=1 // pred_check_branch
      %40 = sbr.rel (0) target = $region17
    $region16: #{tpu_custom_call.1} parent=1 // pred_region
      %42 = vsyncadd [#allocation6], 0
      %s43 = sshll.u32 %s3, 4
      %s44 = int_to_ptr.hbm [resolvable:$true] %s43
      %s45 = sshll.u32 [#allocation7], 4
      %s46 = int_to_ptr.vmem [resolvable:$true] %s45
      %51 = dma.hbm_to_vmem [thread:$0]  %s44, 1024, %s46, [#allocation6], 64, 64, 4
    $region17: #{tpu_custom_call.1} parent=1 // pred_fallthru
      _
    // Predicated region
    $region18: #{tpu_custom_call.1} parent=1 // pred_check
      _
    $region19: #{tpu_custom_call.1} parent=1 // pred_check_branch
      %53 = sbr.rel (0) target = $region21
    $region20: #{tpu_custom_call.1} parent=1 // pred_region
      _
    $region21: #{tpu_custom_call.1} parent=1 // pred_fallthru
      _
    // Predicated region
    $region22: #{tpu_custom_call.1} parent=1 // pred_check
      _
    $region23: #{tpu_custom_call.1} parent=1 // pred_check_branch
      %55 = sbr.rel (0) target = $region25
    $region24: #{tpu_custom_call.1} parent=1 // pred_region
      %57 = dma.done [#allocation3], 64
    $region25: #{tpu_custom_call.1} parent=1 // pred_fallthru
      _
    // Predicated region
    $region26: #{tpu_custom_call.1} parent=1 // pred_check
      _
    $region27: #{tpu_custom_call.1} parent=1 // pred_check_branch
      %59 = sbr.rel (0) target = $region29
    $region28: #{tpu_custom_call.1} parent=1 // pred_region
      %61 = dma.done [#allocation6], 128
    $region29: #{tpu_custom_call.1} parent=1 // pred_fallthru
      _
    // Predicated region
    $region30: #{tpu_custom_call.1} parent=1 // pred_check
      _
    $region31: #{tpu_custom_call.1} parent=1 // pred_check_branch
      %63 = sbr.rel (0) target = $region33
    $region32: #{tpu_custom_call.1} parent=1 // pred_region
      %65 = dma.done [#allocation6], 1024
    $region33: #{tpu_custom_call.1} parent=1 // pred_fallthru
      _
    %v67 = vld [vmem:[#allocation2] sm:$0xf]
    %v68 = vld [vmem:[#allocation5] sm:$0xf]
    %v69 = vld [vmem:[#allocation5 + $0x4] sm:$0xf]
    %v70 = vld [vmem:[%s2] sm:$0x1]
    %v72 = vperm.slane %v70, 0
    %v76 = vunpack.c.l.b16 %v68
    %v77 = vunpack.c.l.b16 %v69
    %v78 = vpack.c.b16 %v77, %v76
    %vm80 = vcmask 130048
    %v82 = vsel %vm80, %v67, 0
    %84 = vmatpush.bf16.msra.mxu0 0
    %85 = vmatpush.bf16.msra.mxu0 0
    %86 = vmatpush.bf16.msra.mxu0 0
    %87 = vmatpush.bf16.msra.mxu0 0
    %88 = vmatpush.bf16.msra.mxu0 0
    %89 = vmatpush.bf16.msra.mxu0 0
    %90 = vmatpush.bf16.msra.mxu0 0
    %91 = vmatpush.bf16.msra.mxu0 %v78
    %92 = vmatmul.bf16.gmra.mxu0 %v82
    %v93 = vpop.f32.mrf.mxu0
    %v94 = vadd.f32 %v72, %v93
    %v95 = vpop.f32.mrf.mxu0
    %96 = vdwg.mxu0
    %v97 = vtanh.pop %v94
    %v98 = vpack.c.bf16 %v97, %v97
    %v99 = vld [vmem:[#allocation7] sm:$0xf]
    %v100 = vld [vmem:[#allocation7 + $0x4] sm:$0xf]
    %v101 = vld [vmem:[#allocation7 + $0x8] sm:$0xf]
    %v102 = vld [vmem:[#allocation7 + $0xc] sm:$0xf]
    %v103 = vld [vmem:[#allocation7 + $0x10] sm:$0xf]
    %v104 = vld [vmem:[#allocation7 + $0x14] sm:$0xf]
    %v105 = vld [vmem:[#allocation7 + $0x18] sm:$0xf]
    %v106 = vld [vmem:[#allocation7 + $0x1c] sm:$0xf]
    %v107 = vld [vmem:[#allocation7 + $0x20] sm:$0xf]
    %v108 = vld [vmem:[#allocation7 + $0x24] sm:$0xf]
    %v109 = vld [vmem:[#allocation7 + $0x28] sm:$0xf]
    %v110 = vld [vmem:[#allocation7 + $0x2c] sm:$0xf]
    %v111 = vld [vmem:[#allocation7 + $0x30] sm:$0xf]
    %v112 = vld [vmem:[#allocation7 + $0x34] sm:$0xf]
    %v113 = vld [vmem:[#allocation7 + $0x38] sm:$0xf]
    %v114 = vld [vmem:[#allocation7 + $0x3c] sm:$0xf]
    %v115 = vld [vmem:[%s4] sm:$0x1]
    %v117 = vperm.slane %v115, 0
    %v135 = vunpack.c.l.b16 %v99
    %v136 = vunpack.c.l.b16 %v100
    %v137 = vunpack.c.l.b16 %v101
    %v138 = vunpack.c.l.b16 %v102
    %v139 = vunpack.c.l.b16 %v103
    %v140 = vunpack.c.l.b16 %v104
    %v141 = vunpack.c.l.b16 %v105
    %v142 = vunpack.c.l.b16 %v106
    %v143 = vunpack.c.l.b16 %v107
    %v144 = vunpack.c.l.b16 %v108
    %v145 = vunpack.c.l.b16 %v109
    %v146 = vunpack.c.l.b16 %v110
    %v147 = vunpack.c.l.b16 %v111
    %v148 = vunpack.c.l.b16 %v112
    %v149 = vunpack.c.l.b16 %v113
    %v150 = vunpack.c.l.b16 %v114
    %v151 = vpack.c.b16 %v136, %v135
    %v152 = vpack.c.b16 %v138, %v137
    %v153 = vpack.c.b16 %v140, %v139
    %v154 = vpack.c.b16 %v142, %v141
    %v155 = vpack.c.b16 %v144, %v143
    %v156 = vpack.c.b16 %v146, %v145
    %v157 = vpack.c.b16 %v148, %v147
    %v158 = vpack.c.b16 %v150, %v149
    %167 = vmatpush.bf16.msra.mxu0 %v158
    %168 = vmatpush.bf16.msra.mxu0 %v157
    %169 = vmatpush.bf16.msra.mxu0 %v156
    %170 = vmatpush.bf16.msra.mxu0 %v155
    %171 = vmatpush.bf16.msra.mxu0 %v154
    %172 = vmatpush.bf16.msra.mxu0 %v153
    %173 = vmatpush.bf16.msra.mxu0 %v152
    %174 = vmatpush.bf16.msra.mxu0 %v151
    %175 = vmatmul.bf16.gmra.mxu0 %v98
    %v176 = vpop.f32.mrf.mxu0
    %v177 = vadd.f32 %v117, %v176
    %v178 = vpop.f32.mrf.mxu0
    %179 = vdwg.mxu0
    %v180 = vlaneseq
    %v181 = vand.u32 %v180, 127
    %vm182 = vcmp.lt.s32.totalorder %v181, 8
    %vm183 = vcmp.ge.s32.totalorder %v181, 8
    %vm184 = vcmp.lt.s32.totalorder %v181, 16
    %vm185 = vmand %vm183, %vm184
    %vm186 = vcmp.ge.s32.totalorder %v181, 16
    %vm187 = vcmp.lt.s32.totalorder %v181, 24
    %vm188 = vmand %vm186, %vm187
    %v189 = vsel %vm182, 1, 0
    %vm190 = vcmp.eq.s32.totalorder %v189, 1
    %v191 = vsel %vm190, %v177, -inf
    %192 = vmax.xlane.f32.xlu0 %v191
    %v193 = vpop.xlane.xlu0 %192
    %v194 = vsub.f32 %v177, %v193
    %v195 = vsel %vm185, 1, 0
    %vm196 = vcmp.eq.s32.totalorder %v195, 1
    %v197 = vsel %vm196, %v177, -inf
    %v198 = vsel %vm190, %v194, %v197
    %v199 = vmul.f32 %v198, 1.442695
    %v200 = vpow.pop %v199
    %v201 = vsel %vm190, %v200, 0.0
    %202 = vadd.xlane.f32.xlu0 %v201
    %v203 = vpop.xlane.xlu0 %202
    %v204 = vrcp.pop %v203
    %v205 = vmul.f32 %v203, %v204
    %v206 = vsub.f32 1.0, %v205
    %v207 = vmul.f32 %v204, %v206
    %v208 = vadd.f32 %v204, %v207
    %vm209 = vweird.f32 %v203
    %vm210 = vweird.f32 %v204
    %vm211 = vmor %vm209, %vm210
    %v212 = vsel %vm211, %v204, %v208
    %v213 = vand.u32 2147483647, %v203
    %vm214 = vcmp.eq.f32.partialorder %v213, 8.507059e+37
    %v215 = vand.u32 %v203, 2147483648
    %v216 = vor.u32 1.1754944e-38, %v215
    %v217 = vsel %vm214, %v216, %v212
    %v218 = vmul.f32 1.0, %v217
    %v219 = vmax.f32 %v177, 0.0
    %v220 = vmul.f32 %v200, %v218
    %v221 = vsel %vm190, %v220, %v200
    %v222 = vsel %vm188, 1, 0
    %vm223 = vcmp.eq.s32.totalorder %v222, 1
    %v224 = vsel %vm223, %v219, %v221
    %vm225 = vcmask 195584
    %226 = vst.msk [vmem:[#allocation8] sm:$0xff] %vm225, %v224
    // Predicated region
    $region34: #{tpu_custom_call.1} parent=1 // pred_check
      _
    $region35: #{tpu_custom_call.1} parent=1 // pred_check_branch
      %228 = sbr.rel (0) target = $region37
    $region36: #{tpu_custom_call.1} parent=1 // pred_region
      %230 = vsyncadd [#allocation4], 0
      %s232 = sshll.u32 [#allocation8], 4
      %s233 = int_to_ptr.vmem [resolvable:$true] %s232
      %s234 = sshll.u32 %s5, 4
      %s235 = int_to_ptr.hbm [resolvable:$true] %s234
      %237 = dma.vmem_to_hbm [thread:$0]  %s233, 128, %s235, [#allocation4]
    $region37: #{tpu_custom_call.1} parent=1 // pred_fallthru
      _
    // Predicated region
    $region38: #{tpu_custom_call.1} parent=1 // pred_check
      _
    $region39: #{tpu_custom_call.1} parent=1 // pred_check_branch
      %239 = sbr.rel (0) target = $region41
    $region40: #{tpu_custom_call.1} parent=1 // pred_region
      %241 = dma.done [#allocation4], 128
    $region41: #{tpu_custom_call.1} parent=1 // pred_fallthru
      _
    %242 = vsyncpa [#allocation3], 1
    %243 = vsyncpa [#allocation6], 1
    %244 = vsyncpa [#allocation4], 1

</llo_original>
